<compile_context>
chip_gen: v5e
topology: v5e:2x2
jax: 0.10.0
libtpu: 0.0.40
codegen_flags: <defaults>
</compile_context>

<pallas_src>
import math
from functools import partial

import jax
import jax.numpy as jnp
from jax.experimental import pallas as pl
from jax.experimental.pallas import tpu as pltpu

_TM_BUDGET = 512          # node rows per grid step: roofline/VMEM budget, NOT batch-derived
_MiB = 1024 * 1024


def _round_up(x, m):
    return (x + m - 1) // m * m


def _linear_kernel(x_ref, w_ref, b_ref, o_ref):
    """o = x @ W + b for one (tm, in_size) node-row tile.

    W / b have constant block indices -> DMA'd once and VMEM-resident across the grid,
    so the MXU keeps the 'push RHS once, many LHS' reuse with no per-step weight reload.
    """
    acc = jnp.dot(x_ref[...], w_ref[...], preferred_element_type=jnp.float32)
    o_ref[...] = (acc + b_ref[...].astype(jnp.float32)).astype(o_ref.dtype)


@partial(jax.jit, static_argnames=("use_bf16",))
def hetero_linear(x, w, b, *, use_bf16=False):
    """x: [N, in], w: [in, out], b: [1, out]  ->  f32 [N, out] = x @ w + b."""
    n, in_size = x.shape
    out_size = w.shape[1]

    if use_bf16:
        x = x.astype(jnp.bfloat16)
        w = w.astype(jnp.bfloat16)

    # Tile of node rows: budget-sized, multiple of 8 sublanes; grid handles any remainder
    # (padded rows of a partial boundary block are computed but never written back).
    tm = min(_TM_BUDGET, _round_up(n, 8))
    grid = (pl.cdiv(n, tm),)

    # Explicit scoped-VMEM budget: double-buffered X/out tiles + the resident W/b copy.
    in_bytes = jnp.dtype(x.dtype).itemsize
    footprint = 2 * (tm * in_size + in_size * out_size + out_size) * in_bytes \
        + 2 * tm * out_size * 4
    vmem_limit = int(min(max(4 * footprint, 32 * _MiB), 48 * _MiB))

    return pl.pallas_call(
        _linear_kernel,
        out_shape=jax.ShapeDtypeStruct((n, out_size), jnp.float32),
        grid_spec=pltpu.PrefetchScalarGridSpec(
            num_scalar_prefetch=0,
            grid=grid,
            in_specs=[
                # Last block dim == full array dim -> no lane padding needed on X.
                pl.BlockSpec((tm, in_size), lambda i: (i, 0)),
                # Constant block index -> single DMA, stays resident for the whole grid.
                pl.BlockSpec((in_size, out_size), lambda i: (0, 0)),
                pl.BlockSpec((1, out_size), lambda i: (0, 0)),
            ],
            out_specs=pl.BlockSpec((tm, out_size), lambda i: (i, 0)),
        ),
        compiler_params=pltpu.CompilerParams(
            dimension_semantics=("parallel",),   # node tiles independent -> megacore OK
            vmem_limit_bytes=vmem_limit,
        ),
    )(x, w, b)


class HeteroRGCNLayerPallas:
    """JAX/Pallas port of HeteroRGCNLayer.

    etype_dict: {(srctype, etype, dsttype): weight_name}; one Linear(in_size, out_size)
    per unique weight_name.

    Assumption (same as the PyTorch reference, which would fail on torch.stack otherwise):
    a source type whose feature width mismatches in_size mismatches for ALL its relations.
    """

    def __init__(self, in_size, out_size, etype_dict, key, *, use_bf16=False):
        self.in_size = in_size
        self.out_size = out_size
        self.etype_dict = dict(etype_dict)
        self.use_bf16 = use_bf16
        self.params = {}
        names = sorted(set(etype_dict.values()))
        bound = 1.0 / math.sqrt(in_size)
        for i, name in enumerate(names):
            kw, kb = jax.random.split(jax.random.fold_in(key, i))
            # Stored pre-transposed [in, out] so the kernel computes x @ W + b directly
            # (mimics nn.Linear's uniform(-1/sqrt(in), 1/sqrt(in)) init).
            W = jax.random.uniform(kw, (in_size, out_size), jnp.float32, -bound, bound)
            b = jax.random.uniform(kb, (out_size,), jnp.float32, -bound, bound)
            self.params[name] = (W, b)
        self._mean_cache = {}

    def _mean_params(self, canonical_etypes):
        """Per-source-type averaged (W, b); computed once and cached (hoisted weight prep)."""
        cache_key = tuple(canonical_etypes)
        if cache_key not in self._mean_cache:
            per_src = {}
            for ce in canonical_etypes:
                per_src.setdefault(ce[0], []).append(self.params[self.etype_dict[ce]])
            means = {}
            for tp, rel_params in per_src.items():
                w_mean = jnp.mean(jnp.stack([W for (W, _) in rel_params]), axis=0)
                b_mean = jnp.mean(jnp.stack([b for (_, b) in rel_params]), axis=0)
                means[tp] = (w_mean, b_mean.reshape(1, self.out_size))
            self._mean_cache[cache_key] = means
        return self._mean_cache[cache_key]

    def __call__(self, canonical_etypes, feat_dict):
        means = self._mean_params(canonical_etypes)
        out = {}
        for tp, x in feat_dict.items():
            if tp not in means:
                # No outgoing relations: pass the original feature through (PyTorch path).
                out[tp] = x
            elif x.shape[1] != self.in_size:
                # Each relation contributes zeros([1, out]); their mean is zeros([1, out]).
                out[tp] = jnp.zeros((1, self.out_size), jnp.float32)
            else:
                w_mean, b_mean = means[tp]
                out[tp] = hetero_linear(x, w_mean, b_mean, use_bf16=self.use_bf16)
        return out


if __name__ == "__main__":
    key = jax.random.PRNGKey(0)

    in_size, out_size = 32, 32

    # Synthetic heterogeneous graph metadata (no DGL needed):
    canonical_etypes = [
        ("user", "follows", "user"),
        ("user", "buys", "item"),
        ("item", "bought-by", "user"),
        ("item", "tagged", "tag"),
        ("shop", "sells", "item"),   # shop feature width != in_size -> zeros branch
    ]
    etype_dict = {ce: ce[1] for ce in canonical_etypes}

    layer = HeteroRGCNLayerPallas(
        in_size, out_size, etype_dict, jax.random.fold_in(key, 100), use_bf16=False
    )

    k_u, k_i, k_t, k_s = jax.random.split(jax.random.fold_in(key, 200), 4)
    feat_dict = {
        "user": jax.random.normal(k_u, (16, in_size), jnp.float32),
        "item": jax.random.normal(k_i, (16, in_size), jnp.float32),
        "tag": jax.random.normal(k_t, (8, in_size), jnp.float32),   # no outgoing edges -> passthrough
        "shop": jax.random.normal(k_s, (6, 48), jnp.float32),       # mismatched in_features -> zeros
    }

    out = layer(canonical_etypes, feat_dict)
    out = {k: jax.block_until_ready(v) for k, v in out.items()}

    # Pure-JAX reference mirroring the PyTorch forward exactly.
    def ref_forward():
        per_src = {k: [] for k in feat_dict}
        for ce in canonical_etypes:
            W, b = layer.params[etype_dict[ce]]
            src = ce[0]
            if W.shape[0] == feat_dict[src].shape[1]:
                per_src[src].append(feat_dict[src] @ W + b)
            else:
                per_src[src].append(jnp.zeros((1, out_size), jnp.float32))
        return {tp: (feat_dict[tp] if not ts else jnp.stack(ts).mean(0))
                for tp, ts in per_src.items()}

    ref = ref_forward()
    for k in feat_dict:
        assert out[k].shape == ref[k].shape, (k, out[k].shape, ref[k].shape)
        assert jnp.allclose(out[k], ref[k], atol=1e-4, rtol=1e-4), k

    print("KERNEL_OK")
</pallas_src>

<mosaic_0001>
module attributes {stable_mosaic.version = 11 : i64} {
  func.func @_linear_kernel(%arg0: i32, %arg1: memref<16x32xf32, #tpu.memory_space<vmem>>, %arg2: memref<32x32xf32, #tpu.memory_space<vmem>>, %arg3: memref<1x32xf32, #tpu.memory_space<vmem>>, %arg4: memref<16x32xf32, #tpu.memory_space<vmem>>) attributes {dimension_semantics = [#tpu.dimension_semantics<parallel>], iteration_bounds = array<i64: 1>, scalar_prefetch = 0 : i64, scratch_operands = 0 : i64, tpu.core_type = #tpu.core_type<tc>, window_params = [{transform_indices = @transform_0, window_bounds = array<i64: 16, 32>}, {pipeline_mode = #tpu.pipeline_mode<synchronous>, transform_indices = @transform_1, window_bounds = array<i64: 32, 32>}, {pipeline_mode = #tpu.pipeline_mode<synchronous>, transform_indices = @transform_2, window_bounds = array<i64: 1, 32>}, {transform_indices = @transform_3, window_bounds = array<i64: 16, 32>}]} {
    %c0 = arith.constant 0 : index
    %c0_0 = arith.constant 0 : index
    %0 = vector.load %arg1[%c0, %c0_0] : memref<16x32xf32, #tpu.memory_space<vmem>>, vector<16x32xf32>
    %c0_1 = arith.constant 0 : index
    %c0_2 = arith.constant 0 : index
    %1 = vector.load %arg2[%c0_1, %c0_2] : memref<32x32xf32, #tpu.memory_space<vmem>>, vector<32x32xf32>
    %cst = arith.constant dense<0.000000e+00> : vector<16x32xf32>
    %2 = tpu.matmul %0, %1, %cst {dimension_numbers = #tpu.dot_dimension_numbers<[1], [0], [0], [1], [0, 0, 1, 1], [], []>} : vector<16x32xf32>, vector<32x32xf32>, vector<16x32xf32> -> vector<16x32xf32>
    %c0_3 = arith.constant 0 : index
    %c0_4 = arith.constant 0 : index
    %3 = vector.load %arg3[%c0_3, %c0_4] : memref<1x32xf32, #tpu.memory_space<vmem>>, vector<1x32xf32>
    %4 = vector.broadcast %3 : vector<1x32xf32> to vector<16x32xf32>
    %5 = arith.addf %2, %4 : vector<16x32xf32>
    %c0_5 = arith.constant 0 : index
    %c0_6 = arith.constant 0 : index
    %6 = vector.load %arg4[%c0_5, %c0_6] : memref<16x32xf32, #tpu.memory_space<vmem>>, vector<16x32xf32>
    tpu.vector_store %arg4[%c0_5, %c0_6], %5 {strides = array<i32>} : memref<16x32xf32, #tpu.memory_space<vmem>>, vector<16x32xf32>,
    return
  }
  func.func @transform_0(%arg0: i32) -> (i32, i32) {
    %c0_i32 = arith.constant 0 : i32
    %c0_i32_0 = arith.constant 0 : i32
    return %arg0, %c0_i32 : i32, i32
  }
  func.func @transform_1(%arg0: i32) -> (i32, i32) {
    %c0_i32 = arith.constant 0 : i32
    %c0_i32_0 = arith.constant 0 : i32
    %c0_i32_1 = arith.constant 0 : i32
    return %c0_i32, %c0_i32_0 : i32, i32
  }
  func.func @transform_2(%arg0: i32) -> (i32, i32) {
    %c0_i32 = arith.constant 0 : i32
    %c0_i32_0 = arith.constant 0 : i32
    %c0_i32_1 = arith.constant 0 : i32
    return %c0_i32, %c0_i32_0 : i32, i32
  }
  func.func @transform_3(%arg0: i32) -> (i32, i32) {
    %c0_i32 = arith.constant 0 : i32
    %c0_i32_0 = arith.constant 0 : i32
    return %arg0, %c0_i32 : i32, i32
  }
}

</mosaic_0001>

<llo_original>
// kernel: hetero_linear.1
$region0: #{hetero_linear.1}
  #allocation0 [shape = 'u32[]', space=smem, size = 0x4, offset = 0x4, fixed_abs, tag = 'smem constant byte address 0x4 - core index']
  #allocation1 [shape = 'u32[72,128]{1,0:T(1,128)}', space=vmem, size = 0x9000, scoped, tag = 'internal scratch']
  %s0 = inlined_call_operand.hbm [shape: f32[16,32], index: 0, kind: input, shape index: {}]
  %s1 = inlined_call_operand.hbm [shape: f32[32,32], index: 1, kind: input, shape index: {}]
  %s2 = inlined_call_operand.vmem [shape: f32[1,32], index: 2, kind: input, shape index: {}]
  %s3 = inlined_call_operand.hbm [shape: f32[16,32], index: 3, kind: output, shape index: {}]
  %s4 = sld [smem:[#allocation0]]
  $region30: #{hetero_linear.1} parent=0
    _
  %s6 = ssub.s32 1, %s4
  %s7 = scalar_select 0, %s6, %s4
  $region1: #{hetero_linear.1} parent=0
    #allocation2 [shape = 'u8[8192]{0}', space=vmem, size = 0x2000, scoped, tag = 'input window, operand 0, single buffered']
    #allocation3 [shape = 's32[1]{0}', space=sflag, size = 0x4, scoped, tag = 'scoped memory for hetero_linear.1']
    #allocation4 [shape = 's32[1]{0}', space=sflag, size = 0x4, scoped, tag = 'scoped memory for hetero_linear.1']
    #allocation5 [shape = 'u8[16384]{0}', space=vmem, size = 0x4000, scoped, tag = 'input window, operand 1, single buffered']
    #allocation6 [shape = 's32[1]{0}', space=sflag, size = 0x4, scoped, tag = 'scoped memory for hetero_linear.1']
    #allocation7 [shape = 'u8[8192]{0}', space=vmem, size = 0x2000, scoped, tag = 'output window, operand 0, single buffered']
    %8 = vsyncpa [#allocation3], 0
    %9 = vsyncpa [#allocation6], 0
    %10 = vsyncpa [#allocation4], 0
    // Predicated region
    $region2: #{hetero_linear.1} parent=1 // pred_check
      _
    $region3: #{hetero_linear.1} parent=1 // pred_check_branch
      %12 = sbr.rel (0) target = $region5
    $region4: #{hetero_linear.1} parent=1 // pred_region
      %14 = vsyncadd [#allocation3], 0
      %s15 = sshll.u32 %s0, 4
      %s16 = int_to_ptr.hbm [resolvable:$true] %s15
      %s17 = sshll.u32 [#allocation2], 4
      %s18 = int_to_ptr.vmem [resolvable:$true] %s17
      %23 = dma.hbm_to_vmem [thread:$0]  %s16, 256, %s18, [#allocation3], 128, 128, 8
    $region5: #{hetero_linear.1} parent=1 // pred_fallthru
      _
    // Predicated region
    $region6: #{hetero_linear.1} parent=1 // pred_check
      _
    $region7: #{hetero_linear.1} parent=1 // pred_check_branch
      %25 = sbr.rel (0) target = $region9
    $region8: #{hetero_linear.1} parent=1 // pred_region
      %27 = vsyncadd [#allocation6], 0
      %s28 = sshll.u32 %s1, 4
      %s29 = int_to_ptr.hbm [resolvable:$true] %s28
      %s30 = sshll.u32 [#allocation5], 4
      %s31 = int_to_ptr.vmem [resolvable:$true] %s30
      %36 = dma.hbm_to_vmem [thread:$0]  %s29, 512, %s31, [#allocation6], 128, 128, 8
    $region9: #{hetero_linear.1} parent=1 // pred_fallthru
      _
    // Predicated region
    $region10: #{hetero_linear.1} parent=1 // pred_check
      _
    $region11: #{hetero_linear.1} parent=1 // pred_check_branch
      %38 = sbr.rel (0) target = $region13
    $region12: #{hetero_linear.1} parent=1 // pred_region
      _
    $region13: #{hetero_linear.1} parent=1 // pred_fallthru
      _
    // Predicated region
    $region14: #{hetero_linear.1} parent=1 // pred_check
      _
    $region15: #{hetero_linear.1} parent=1 // pred_check_branch
      %40 = sbr.rel (0) target = $region17
    $region16: #{hetero_linear.1} parent=1 // pred_region
      %42 = dma.done [#allocation3], 256
    $region17: #{hetero_linear.1} parent=1 // pred_fallthru
      _
    // Predicated region
    $region18: #{hetero_linear.1} parent=1 // pred_check
      _
    $region19: #{hetero_linear.1} parent=1 // pred_check_branch
      %44 = sbr.rel (0) target = $region21
    $region20: #{hetero_linear.1} parent=1 // pred_region
      %46 = dma.done [#allocation6], 512
    $region21: #{hetero_linear.1} parent=1 // pred_fallthru
      _
    %v47 = vld [vmem:[#allocation2] sm:$0xff]
    %v48 = vld [vmem:[#allocation2 + $0x8] sm:$0xff]
    %v49 = vld [vmem:[#allocation5] sm:$0xff]
    %v50 = vld [vmem:[#allocation5 + $0x8] sm:$0xff]
    %v51 = vld [vmem:[#allocation5 + $0x10] sm:$0xff]
    %v52 = vld [vmem:[#allocation5 + $0x18] sm:$0xff]
    %v53 = vld [vmem:[%s2] sm:$0x1]
    %v55 = vperm.slane %v53, 0
    %vm57 = vcmask 261120
    %v59 = vsel %vm57, %v47, 0
    %v62 = vsel %vm57, %v48, 0
    %64 = vmatpush.msra.mxu0 0.0
    %65 = vmatpush.msra.mxu0 0.0
    %66 = vmatpush.msra.mxu0 0.0
    %67 = vmatpush.msra.mxu0 0.0
    %68 = vmatpush.msra.mxu0 0.0
    %69 = vmatpush.msra.mxu0 0.0
    %70 = vmatpush.msra.mxu0 0.0
    %71 = vmatpush.msra.mxu0 0.0
    %72 = vmatpush.msra.mxu0 0.0
    %73 = vmatpush.msra.mxu0 0.0
    %74 = vmatpush.msra.mxu0 0.0
    %75 = vmatpush.msra.mxu0 0.0
    %76 = vmatpush.msra.mxu0 %v52
    %77 = vmatpush.msra.mxu0 %v51
    %78 = vmatpush.msra.mxu0 %v50
    %79 = vmatpush.msra.mxu0 %v49
    %80 = vmatmul.f32.gmra.mxu0 %v59
    %v81 = vpop.f32.mrf.mxu0
    %v82 = vadd.f32 %v55, %v81
    %83 = vmatmul.f32.gmra.mxu0 %v62
    %v84 = vpop.f32.mrf.mxu0
    %v85 = vadd.f32 %v55, %v84
    %86 = vdwg.mxu0
    %87 = vst.msk [vmem:[#allocation7] sm:$0xff] %vm57, %v82
    %88 = vst.msk [vmem:[#allocation7 + $0x8] sm:$0xff] %vm57, %v85
    // Predicated region
    $region22: #{hetero_linear.1} parent=1 // pred_check
      _
    $region23: #{hetero_linear.1} parent=1 // pred_check_branch
      %90 = sbr.rel (0) target = $region25
    $region24: #{hetero_linear.1} parent=1 // pred_region
      %92 = vsyncadd [#allocation4], 0
      %s93 = sshll.u32 [#allocation7], 4
      %s94 = int_to_ptr.vmem [resolvable:$true] %s93
      %s95 = sshll.u32 %s3, 4
      %s96 = int_to_ptr.hbm [resolvable:$true] %s95
      %101 = dma.vmem_to_hbm [thread:$0]  %s94, 256, %s96, [#allocation4], 128, 128, 8
    $region25: #{hetero_linear.1} parent=1 // pred_fallthru
      _
    // Predicated region
    $region26: #{hetero_linear.1} parent=1 // pred_check
      _
    $region27: #{hetero_linear.1} parent=1 // pred_check_branch
      %103 = sbr.rel (0) target = $region29
    $region28: #{hetero_linear.1} parent=1 // pred_region
      %105 = dma.done [#allocation4], 256
    $region29: #{hetero_linear.1} parent=1 // pred_fallthru
      _
    %106 = vsyncpa [#allocation3], 1
    %107 = vsyncpa [#allocation6], 1
    %108 = vsyncpa [#allocation4], 1

</llo_original>
